<compile_context>
chip_gen: v7x
topology: tpu7x:2x2x1
jax: 0.10.0
libtpu: 0.0.40
codegen_flags: <defaults>
</compile_context>

<pallas_src>
import math

import numpy as np
import jax
import jax.numpy as jnp
from jax.experimental import pallas as pl
from jax.experimental.pallas import tpu as pltpu


_C1 = 0.01 ** 2
_C2 = 0.03 ** 2


# ----------------------------- Pallas kernel -------------------------------

def s3im_kernel(src_ref, tar_ref, win_ref, out_ref):
    # src_ref, tar_ref: [K, TM] im2col patches (K window taps on sublanes,
    # TM conv-output positions on lanes); win_ref: [K, 1]; out_ref: [1, TM].
    x = src_ref[...].astype(jnp.float32)
    y = tar_ref[...].astype(jnp.float32)
    # Hoist the (single) broadcast of the window column across lanes.
    w = jnp.broadcast_to(win_ref[...].astype(jnp.float32), x.shape)

    # Factor the window multiply: 5 weighted sums from 2 products + 3 extra muls.
    xw = x * w
    yw = y * w
    mu1 = jnp.sum(xw, axis=0, keepdims=True)       # [1, TM]
    mu2 = jnp.sum(yw, axis=0, keepdims=True)
    ex2 = jnp.sum(xw * x, axis=0, keepdims=True)   # E[x^2]
    ey2 = jnp.sum(yw * y, axis=0, keepdims=True)   # E[y^2]
    exy = jnp.sum(xw * y, axis=0, keepdims=True)   # E[x*y]

    mu1_sq = mu1 * mu1
    mu2_sq = mu2 * mu2
    mu1_mu2 = mu1 * mu2
    sigma1_sq = ex2 - mu1_sq
    sigma2_sq = ey2 - mu2_sq
    sigma12 = exy - mu1_mu2

    num = (2.0 * mu1_mu2 + _C1) * (2.0 * sigma12 + _C2)
    den = (mu1_sq + mu2_sq + _C1) * (sigma1_sq + sigma2_sq + _C2)
    # EUP reciprocal instead of a VPU divide sequence (den >= C1*C2 > 0 always).
    out_ref[...] = num * pl.reciprocal(den, approx=True)


# ------------------------------ JAX wrapper ---------------------------------

def _gaussian_window(kernel_size: int, sigma: float = 1.5) -> np.ndarray:
    g = np.array(
        [math.exp(-((x - kernel_size // 2) ** 2) / float(2 * sigma ** 2))
         for x in range(kernel_size)],
        dtype=np.float64,
    )
    g = g / g.sum()
    # matches create_window: _1D_window.mm(_1D_window.t())
    return np.outer(g, g).astype(np.float32)


def _round_up(x: int, m: int) -> int:
    return ((x + m - 1) // m) * m


def _prep_patches(src_vec, tar_vec, *, kernel_size, stride, repeat_time,
                  patch_height, patch_width, key):
    """Glue (gather / reshape / pad / im2col) in plain JAX, emitted lane-dense.

    Returns (src_p, tar_p, win, m): src_p/tar_p of shape [K, M] (f32, K = k*k
    window taps, M = C*OH*OW conv-output positions), win of shape [K, 1].
    """
    assert stride == kernel_size, "im2col formulation assumes stride == kernel_size"
    n, c = tar_vec.shape

    # index shuffling: first block identity, rest random permutations
    idx_blocks = [jnp.arange(n)]
    for i in range(1, repeat_time):
        idx_blocks.append(jax.random.permutation(jax.random.fold_in(key, i), n))
    res_index = jnp.concatenate(idx_blocks, axis=0)

    tar_all = tar_vec[res_index]                  # [R*N, C]
    src_all = src_vec[res_index]

    h = patch_height
    w_tot = patch_width * repeat_time
    tar_img = tar_all.T.reshape(c, h, w_tot)      # NCHW with batch squeezed
    src_img = src_all.T.reshape(c, h, w_tot)

    pad = (kernel_size - 1) // 2
    oh = (h + 2 * pad - kernel_size) // stride + 1
    ow = (w_tot + 2 * pad - kernel_size) // stride + 1

    def im2col_t(img):
        # -> [K, M]: row = u*kernel_size + v (window tap), col = output position.
        p = jnp.pad(img, ((0, 0), (pad, pad), (pad, pad)))
        p = p[:, : stride * oh, : stride * ow]
        p = p.reshape(c, oh, kernel_size, ow, kernel_size)
        p = p.transpose(2, 4, 0, 1, 3).reshape(kernel_size * kernel_size, c * oh * ow)
        return p.astype(jnp.float32)

    win = jnp.asarray(
        _gaussian_window(kernel_size).reshape(kernel_size * kernel_size, 1))
    return im2col_t(src_img), im2col_t(tar_img), win, c * oh * ow


def s3im_loss(src_vec, tar_vec, *, kernel_size=4, stride=4, repeat_time=10,
              patch_height=64, patch_width=64, key=None, block_m=512,
              bf16_inputs=True):
    if key is None:
        key = jax.random.PRNGKey(0)
    src_p, tar_p, win, m = _prep_patches(
        src_vec, tar_vec, kernel_size=kernel_size, stride=stride,
        repeat_time=repeat_time, patch_height=patch_height,
        patch_width=patch_width, key=key)

    kk = kernel_size * kernel_size
    # Lane tile over M: multiple of 128, capped by block_m, at least one full tile.
    tm = max(128, min(block_m, _round_up(m, 128)))
    m_pad = _round_up(m, tm)
    in_dtype = jnp.bfloat16 if bf16_inputs else jnp.float32
    src_pp = jnp.pad(src_p, ((0, 0), (0, m_pad - m))).astype(in_dtype)
    tar_pp = jnp.pad(tar_p, ((0, 0), (0, m_pad - m))).astype(in_dtype)

    ssim_rows = pl.pallas_call(
        s3im_kernel,
        out_shape=jax.ShapeDtypeStruct((1, m_pad), jnp.float32),
        grid_spec=pltpu.PrefetchScalarGridSpec(
            num_scalar_prefetch=0,
            grid=(m_pad // tm,),
            in_specs=[
                pl.BlockSpec((kk, tm), lambda i: (0, i)),
                pl.BlockSpec((kk, tm), lambda i: (0, i)),
                pl.BlockSpec((kk, 1), lambda i: (0, 0)),
            ],
            out_specs=pl.BlockSpec((1, tm), lambda i: (0, i)),
        ),
        compiler_params=pltpu.CompilerParams(
            dimension_semantics=("parallel",)),
    )(src_pp, tar_pp, win)

    # Finish the tiny mean in JAX, dropping the zero-padded columns.
    ssim_mean = jnp.sum(ssim_rows[0, :m]) / float(m)
    return 1.0 - ssim_mean


def s3im_loss_reference(src_vec, tar_vec, **kwargs):
    """Plain-JAX f32 reference (same glue, no Pallas) for a tolerance check."""
    x, y, w, _ = _prep_patches(src_vec, tar_vec, **kwargs)
    mu1 = jnp.sum(x * w, axis=0)
    mu2 = jnp.sum(y * w, axis=0)
    sigma1_sq = jnp.sum(x * x * w, axis=0) - mu1 * mu1
    sigma2_sq = jnp.sum(y * y * w, axis=0) - mu2 * mu2
    sigma12 = jnp.sum(x * y * w, axis=0) - mu1 * mu2
    num = (2.0 * mu1 * mu2 + _C1) * (2.0 * sigma12 + _C2)
    den = (mu1 * mu1 + mu2 * mu2 + _C1) * (sigma1_sq + sigma2_sq + _C2)
    return 1.0 - jnp.mean(num / den)


# --------------------------------- main --------------------------------------

if __name__ == "__main__":
    # small shapes consistent with the module: patch 16x16, repeat_time=2 -> N = 256
    patch_height, patch_width, repeat_time = 16, 16, 2
    n = patch_height * patch_width

    key = jax.random.PRNGKey(0)
    k_src, k_tar, k_perm = jax.random.split(key, 3)
    src_vec = jax.random.uniform(k_src, (n, 3), dtype=jnp.float32)
    tar_vec = jax.random.uniform(k_tar, (n, 3), dtype=jnp.float32)

    kwargs = dict(kernel_size=4, stride=4, repeat_time=repeat_time,
                  patch_height=patch_height, patch_width=patch_width, key=k_perm)

    loss = jax.block_until_ready(s3im_loss(src_vec, tar_vec, **kwargs))
    ref = jax.block_until_ready(s3im_loss_reference(src_vec, tar_vec, **kwargs))

    assert bool(jnp.isfinite(loss)), "non-finite S3IM loss"
    # generous tolerance: bf16 input DMAs + approx reciprocal vs full-f32 reference
    assert abs(float(loss) - float(ref)) < 2e-2, (float(loss), float(ref))
    print("KERNEL_OK")
</pallas_src>

<mosaic_0001>
module attributes {stable_mosaic.version = 11 : i64} {
  func.func @s3im_kernel(%arg0: i32, %arg1: memref<16x128xbf16, #tpu.memory_space<vmem>>, %arg2: memref<16x128xbf16, #tpu.memory_space<vmem>>, %arg3: memref<16x1xf32, #tpu.memory_space<vmem>>, %arg4: memref<1x128xf32, #tpu.memory_space<vmem>>) attributes {dimension_semantics = [#tpu.dimension_semantics<parallel>], iteration_bounds = array<i64: 1>, scalar_prefetch = 0 : i64, scratch_operands = 0 : i64, tpu.core_type = #tpu.core_type<tc>, window_params = [{transform_indices = @transform_0, window_bounds = array<i64: 16, 128>}, {transform_indices = @transform_1, window_bounds = array<i64: 16, 128>}, {pipeline_mode = #tpu.pipeline_mode<synchronous>, transform_indices = @transform_2, window_bounds = array<i64: 16, 1>}, {transform_indices = @transform_3, window_bounds = array<i64: 1, 128>}]} {
    %c0 = arith.constant 0 : index
    %c0_0 = arith.constant 0 : index
    %0 = vector.load %arg1[%c0, %c0_0] : memref<16x128xbf16, #tpu.memory_space<vmem>>, vector<16x128xbf16>
    %1 = arith.extf %0 : vector<16x128xbf16> to vector<16x128xf32>
    %c0_1 = arith.constant 0 : index
    %c0_2 = arith.constant 0 : index
    %2 = vector.load %arg2[%c0_1, %c0_2] : memref<16x128xbf16, #tpu.memory_space<vmem>>, vector<16x128xbf16>
    %3 = arith.extf %2 : vector<16x128xbf16> to vector<16x128xf32>
    %c0_3 = arith.constant 0 : index
    %c0_4 = arith.constant 0 : index
    %4 = vector.load %arg3[%c0_3, %c0_4] : memref<16x1xf32, #tpu.memory_space<vmem>>, vector<16x1xf32>
    %5 = vector.shape_cast %4 : vector<16x1xf32> to vector<16x1xf32>
    %6 = vector.broadcast %5 : vector<16x1xf32> to vector<16x128xf32>
    %7 = arith.mulf %1, %6 : vector<16x128xf32>
    %8 = arith.mulf %3, %6 : vector<16x128xf32>
    %cst = arith.constant dense<0.000000e+00> : vector<128xf32>
    %9 = vector.multi_reduction <add>, %7, %cst [0] : vector<16x128xf32> to vector<128xf32>
    %10 = vector.shape_cast %9 : vector<128xf32> to vector<1x128xf32>
    %cst_5 = arith.constant dense<0.000000e+00> : vector<128xf32>
    %11 = vector.multi_reduction <add>, %8, %cst_5 [0] : vector<16x128xf32> to vector<128xf32>
    %12 = vector.shape_cast %11 : vector<128xf32> to vector<1x128xf32>
    %13 = arith.mulf %7, %1 : vector<16x128xf32>
    %cst_6 = arith.constant dense<0.000000e+00> : vector<128xf32>
    %14 = vector.multi_reduction <add>, %13, %cst_6 [0] : vector<16x128xf32> to vector<128xf32>
    %15 = vector.shape_cast %14 : vector<128xf32> to vector<1x128xf32>
    %16 = arith.mulf %8, %3 : vector<16x128xf32>
    %cst_7 = arith.constant dense<0.000000e+00> : vector<128xf32>
    %17 = vector.multi_reduction <add>, %16, %cst_7 [0] : vector<16x128xf32> to vector<128xf32>
    %18 = vector.shape_cast %17 : vector<128xf32> to vector<1x128xf32>
    %19 = arith.mulf %7, %3 : vector<16x128xf32>
    %cst_8 = arith.constant dense<0.000000e+00> : vector<128xf32>
    %20 = vector.multi_reduction <add>, %19, %cst_8 [0] : vector<16x128xf32> to vector<128xf32>
    %21 = vector.shape_cast %20 : vector<128xf32> to vector<1x128xf32>
    %22 = arith.mulf %10, %10 : vector<1x128xf32>
    %23 = arith.mulf %12, %12 : vector<1x128xf32>
    %24 = arith.mulf %10, %12 : vector<1x128xf32>
    %25 = arith.subf %15, %22 : vector<1x128xf32>
    %26 = arith.subf %18, %23 : vector<1x128xf32>
    %27 = arith.subf %21, %24 : vector<1x128xf32>
    %cst_9 = arith.constant 2.000000e+00 : f32
    %28 = vector.broadcast %cst_9 : f32 to vector<1x128xf32>
    %29 = arith.mulf %28, %24 : vector<1x128xf32>
    %cst_10 = arith.constant 9.99999974E-5 : f32
    %30 = vector.broadcast %cst_10 : f32 to vector<1x128xf32>
    %31 = arith.addf %29, %30 : vector<1x128xf32>
    %cst_11 = arith.constant 2.000000e+00 : f32
    %32 = vector.broadcast %cst_11 : f32 to vector<1x128xf32>
    %33 = arith.mulf %32, %27 : vector<1x128xf32>
    %cst_12 = arith.constant 8.99999984E-4 : f32
    %34 = vector.broadcast %cst_12 : f32 to vector<1x128xf32>
    %35 = arith.addf %33, %34 : vector<1x128xf32>
    %36 = arith.mulf %31, %35 : vector<1x128xf32>
    %37 = arith.addf %22, %23 : vector<1x128xf32>
    %cst_13 = arith.constant 9.99999974E-5 : f32
    %38 = vector.broadcast %cst_13 : f32 to vector<1x128xf32>
    %39 = arith.addf %37, %38 : vector<1x128xf32>
    %40 = arith.addf %25, %26 : vector<1x128xf32>
    %cst_14 = arith.constant 8.99999984E-4 : f32
    %41 = vector.broadcast %cst_14 : f32 to vector<1x128xf32>
    %42 = arith.addf %40, %41 : vector<1x128xf32>
    %43 = arith.mulf %39, %42 : vector<1x128xf32>
    %44 = tpu.reciprocal %43 {approx = true} : vector<1x128xf32> -> vector<1x128xf32>
    %45 = arith.mulf %36, %44 : vector<1x128xf32>
    %c0_15 = arith.constant 0 : index
    %c0_16 = arith.constant 0 : index
    %46 = vector.load %arg4[%c0_15, %c0_16] : memref<1x128xf32, #tpu.memory_space<vmem>>, vector<1x128xf32>
    tpu.vector_store %arg4[%c0_15, %c0_16], %45 {strides = array<i32>} : memref<1x128xf32, #tpu.memory_space<vmem>>, vector<1x128xf32>,
    return
  }
  func.func @transform_0(%arg0: i32) -> (i32, i32) {
    %c0_i32 = arith.constant 0 : i32
    %c0_i32_0 = arith.constant 0 : i32
    return %c0_i32, %arg0 : i32, i32
  }
  func.func @transform_1(%arg0: i32) -> (i32, i32) {
    %c0_i32 = arith.constant 0 : i32
    %c0_i32_0 = arith.constant 0 : i32
    return %c0_i32, %arg0 : i32, i32
  }
  func.func @transform_2(%arg0: i32) -> (i32, i32) {
    %c0_i32 = arith.constant 0 : i32
    %c0_i32_0 = arith.constant 0 : i32
    %c0_i32_1 = arith.constant 0 : i32
    return %c0_i32, %c0_i32_0 : i32, i32
  }
  func.func @transform_3(%arg0: i32) -> (i32, i32) {
    %c0_i32 = arith.constant 0 : i32
    %c0_i32_0 = arith.constant 0 : i32
    return %c0_i32, %arg0 : i32, i32
  }
}

</mosaic_0001>

<llo_original>
// kernel: tpu_custom_call.1
$region0: #{tpu_custom_call.1}
  #allocation0 [shape = 'u32[]', space=smem, size = 0x4, offset = 0x4, fixed_abs, tag = 'smem constant byte address 0x4 - core index']
  #allocation1 [shape = 'u32[144,128]{1,0:T(1,128)}', space=vmem, size = 0x12000, scoped, tag = 'internal scratch']
  %s0 = inlined_call_operand.vmem [shape: bf16[16,128], index: 0, kind: input, shape index: {}]
  %s1 = inlined_call_operand.vmem [shape: bf16[16,128], index: 1, kind: input, shape index: {}]
  %s2 = inlined_call_operand.vmem [shape: f32[16,1], index: 2, kind: input, shape index: {}]
  %s3 = inlined_call_operand.hbm [shape: f32[1,128], index: 3, kind: output, shape index: {}]
  %s4 = sld [smem:[#allocation0]]
  $region22: #{tpu_custom_call.1} parent=0
    _
  %s6 = ssub.s32 1, %s4
  %s7 = scalar_select 0, %s6, %s4
  $region1: #{tpu_custom_call.1} parent=0
    #allocation2 [shape = 'u8[512]{0}', space=vmem, size = 0x400, scoped, tag = 'output window, operand 0, single buffered']
    #allocation3 [shape = 's32[1]{0}', space=sflag, size = 0x4, scoped, tag = 'scoped memory for tpu_custom_call.1']
    %8 = vsyncpa [#allocation3], 0
    // Predicated region
    $region2: #{tpu_custom_call.1} parent=1 // pred_check
      _
    $region3: #{tpu_custom_call.1} parent=1 // pred_check_branch
      %10 = sbr.rel (0) target = $region5
    $region4: #{tpu_custom_call.1} parent=1 // pred_region
      _
    $region5: #{tpu_custom_call.1} parent=1 // pred_fallthru
      _
    // Predicated region
    $region6: #{tpu_custom_call.1} parent=1 // pred_check
      _
    $region7: #{tpu_custom_call.1} parent=1 // pred_check_branch
      %12 = sbr.rel (0) target = $region9
    $region8: #{tpu_custom_call.1} parent=1 // pred_region
      _
    $region9: #{tpu_custom_call.1} parent=1 // pred_fallthru
      _
    // Predicated region
    $region10: #{tpu_custom_call.1} parent=1 // pred_check
      _
    $region11: #{tpu_custom_call.1} parent=1 // pred_check_branch
      %14 = sbr.rel (0) target = $region13
    $region12: #{tpu_custom_call.1} parent=1 // pred_region
      _
    $region13: #{tpu_custom_call.1} parent=1 // pred_fallthru
      _
    %v15 = vld [vmem:[%s0] sm:$0xf]
    %v16 = vld [vmem:[%s0 + $0x4] sm:$0xf]
    %v17 = vunpack.c.l.bf16 %v15
    %v18 = vunpack.c.l.bf16 %v16
    %v19 = vld [vmem:[%s1] sm:$0xf]
    %v20 = vld [vmem:[%s1 + $0x4] sm:$0xf]
    %v21 = vunpack.c.l.bf16 %v19
    %v22 = vunpack.c.l.bf16 %v20
    %v23 = vld [vmem:[%s2] sm:$0xff]
    %v24 = vld [vmem:[%s2 + $0x8] sm:$0xff]
    %26 = vset.pattern.permute.xlu0 0
    %27 = vperm.xlu0 %26, %v23
    %v28 = vpop.permute.xlu0 %27
    %31 = vset.pattern.permute.xlu0 0
    %32 = vperm.xlu0 %31, %v24
    %v33 = vpop.permute.xlu0 %32
    %v35 = vmul.f32 %v17, %v28
    %v36 = vmul.f32 %v18, %v33
    %v37 = vmul.f32 %v21, %v28
    %v38 = vmul.f32 %v22, %v33
    %v39 = vadd.f32 %v35, %v36
    %v40 = vrot.slane %v39, 4
    %v41 = vadd.f32 %v39, %v40
    %v42 = vrot.slane %v41, 2
    %v43 = vadd.f32 %v41, %v42
    %v44 = vrot.slane %v43, 1
    %v45 = vadd.f32 %v43, %v44
    %v46 = vadd.f32 %v37, %v38
    %v47 = vrot.slane %v46, 4
    %v48 = vadd.f32 %v46, %v47
    %v49 = vrot.slane %v48, 2
    %v50 = vadd.f32 %v48, %v49
    %v51 = vrot.slane %v50, 1
    %v52 = vadd.f32 %v50, %v51
    %v53 = vmul.f32 %v35, %v17
    %v54 = vmul.f32 %v36, %v18
    %v55 = vadd.f32 %v53, %v54
    %v56 = vrot.slane %v55, 4
    %v57 = vadd.f32 %v55, %v56
    %v58 = vrot.slane %v57, 2
    %v59 = vadd.f32 %v57, %v58
    %v60 = vrot.slane %v59, 1
    %v61 = vadd.f32 %v59, %v60
    %v62 = vmul.f32 %v37, %v21
    %v63 = vmul.f32 %v38, %v22
    %v64 = vadd.f32 %v62, %v63
    %v65 = vrot.slane %v64, 4
    %v66 = vadd.f32 %v64, %v65
    %v67 = vrot.slane %v66, 2
    %v68 = vadd.f32 %v66, %v67
    %v69 = vrot.slane %v68, 1
    %v70 = vadd.f32 %v68, %v69
    %v71 = vmul.f32 %v35, %v21
    %v72 = vmul.f32 %v36, %v22
    %v73 = vadd.f32 %v71, %v72
    %v74 = vrot.slane %v73, 4
    %v75 = vadd.f32 %v73, %v74
    %v76 = vrot.slane %v75, 2
    %v77 = vadd.f32 %v75, %v76
    %v78 = vrot.slane %v77, 1
    %v79 = vadd.f32 %v77, %v78
    %v80 = vmul.f32 %v45, %v45
    %v81 = vmul.f32 %v52, %v52
    %v82 = vmul.f32 %v45, %v52
    %v83 = vsub.f32 %v61, %v80
    %v84 = vsub.f32 %v70, %v81
    %v85 = vsub.f32 %v79, %v82
    %v86 = vmul.f32 %v82, 2.0
    %v87 = vadd.f32 %v86, 0.0001
    %v88 = vmul.f32 %v85, 2.0
    %v89 = vadd.f32 %v88, 0.0009
    %v90 = vmul.f32 %v87, %v89
    %v91 = vadd.f32 %v80, %v81
    %v92 = vadd.f32 %v91, 0.0001
    %v93 = vadd.f32 %v83, %v84
    %v94 = vadd.f32 %v93, 0.0009
    %v95 = vmul.f32 %v92, %v94
    %v96 = vrcp.pop %v95
    %v97 = vmul.f32 %v90, %v96
    %98 = vst [vmem:[#allocation2] sm:$0x1] %v97
    // Predicated region
    $region14: #{tpu_custom_call.1} parent=1 // pred_check
      _
    $region15: #{tpu_custom_call.1} parent=1 // pred_check_branch
      %100 = sbr.rel (0) target = $region17
    $region16: #{tpu_custom_call.1} parent=1 // pred_region
      %s102 = ssub.s32 16, 16
      %103 = vsyncadd [#allocation3], %s102
      %s105 = sshll.u32 [#allocation2], 4
      %s106 = int_to_ptr.vmem [resolvable:$true] %s105
      %108 = dma.vmem_to_hbm [thread:$0]  %s106, 16, %s3, [#allocation3]
    $region17: #{tpu_custom_call.1} parent=1 // pred_fallthru
      _
    // Predicated region
    $region18: #{tpu_custom_call.1} parent=1 // pred_check
      _
    $region19: #{tpu_custom_call.1} parent=1 // pred_check_branch
      %110 = sbr.rel (0) target = $region21
    $region20: #{tpu_custom_call.1} parent=1 // pred_region
      %111 = dma.done [#allocation3], 16
    $region21: #{tpu_custom_call.1} parent=1 // pred_fallthru
      _
    %112 = vsyncpa [#allocation3], 1

</llo_original>
